<compile_context>
chip_gen: v7x
topology: tpu7x:2x2x1
jax: 0.10.0
libtpu: 0.0.40
codegen_flags: <defaults>
</compile_context>

<pallas_src>
import math

import jax
import jax.numpy as jnp
from jax.experimental import pallas as pl
from jax.experimental.pallas import tpu as pltpu


def _round_up(n, m):
    return (n + m - 1) // m * m


def _vmem_limit_bytes():
    # ~75% of physical VMEM (96 MiB on v5e/v6e, 48 MiB on v7x): lifts the
    # 16/32 MiB scoped default while leaving headroom for double buffers.
    try:
        cap = int(pltpu.get_tpu_info().vmem_capacity_bytes)
    except Exception:
        cap = 64 * 1024 * 1024
    return cap * 3 // 4


def _constants(s, m):
    # Compile-time constants (Mosaic constant-folds these).
    s10 = float(s) * 10.0                      # s * 10
    return s10, s10 * math.cos(float(m)), s10 * math.sin(float(m))


def _cos_terms(x, w_tile, colscale, s10, c_cos, c_sin):
    """Shared per-tile math: z_cos = s*cosa*10, z_arc = s*cos(acos(cosa)+m)*10.

    Row/column L2 normalization and the module's /10 are folded into a single
    broadcast scale applied after the MXU matmul (no normalized copies of x/w).
    """
    ssq = jnp.sum(x * x, axis=1, keepdims=True)            # (tb, 1)
    row_inv = jax.lax.rsqrt(jnp.maximum(ssq, 1e-24))       # F.normalize eps
    raw = jnp.dot(x, w_tile, preferred_element_type=jnp.float32)
    cosa = raw * row_inv * colscale                        # (tb, tc)
    # cos(acos(c) + m) = c*cos(m) - sqrt(1-c^2)*sin(m), acos range [0, pi].
    sin_a = jnp.sqrt(jnp.maximum(1.0 - cosa * cosa, 0.0))
    z_cos = s10 * cosa
    z_arc = c_cos * cosa - c_sin * sin_a
    return z_cos, z_arc


def _pad_mask(c_start, tc, c_real):
    # Additive bias that pushes padded class columns to exp(...) == 0.
    col = c_start + jax.lax.broadcasted_iota(jnp.int32, (1, tc), 1)
    return jnp.where(col < c_real, 0.0, -1e30).astype(jnp.float32)


# ---------------------------------------------------------------------------
# Path A: resident (single-buffered) weight, full class axis per block.
# ---------------------------------------------------------------------------
def _make_fullc_kernel(s, m, c_real, c_pad):
    s10, c_cos, c_sin = _constants(s, m)
    need_mask = c_pad != c_real

    def kernel(x_ref, w_ref, colscale_ref, out_ref):
        z_cos, z_arc = _cos_terms(x_ref[...], w_ref[...], colscale_ref[...],
                                  s10, c_cos, c_sin)
        if need_mask:
            neg = _pad_mask(0, c_pad, c_real)
            z_cos = z_cos + neg
            z_arc = z_arc + neg

        # Per-row max shift: multiplies numerator and denominator of the ratio
        # by the same exp(-zmax) => mathematically unchanged, never overflows.
        zmax = jnp.maximum(jnp.max(z_cos, axis=1, keepdims=True),
                           jnp.max(z_arc, axis=1, keepdims=True))
        e_cos = jnp.exp(z_cos - zmax)
        e_arc = jnp.exp(z_arc - zmax)
        denom = jnp.sum(e_cos, axis=1, keepdims=True) - e_cos + e_arc

        # Un-normalized arcs go straight into the output block (one fewer live
        # (tb, C) temporary), then the rows are renormalized in place.
        out_ref[...] = e_arc * pl.reciprocal(denom, approx=True)
        t = jnp.sum(out_ref[...], axis=1, keepdims=True)
        out_ref[...] = out_ref[...] * pl.reciprocal(t, approx=True)

    return kernel


def _arcsoftmax_fullc(x, w, colscale, s, m, c_real, tb, vmem_limit):
    B_pad, F_pad = x.shape
    C_pad = w.shape[1]
    kernel = _make_fullc_kernel(s, m, c_real, C_pad)
    params = pltpu.CompilerParams(dimension_semantics=("parallel",),
                                  vmem_limit_bytes=vmem_limit)

    def run(single_buffer_w):
        if single_buffer_w:
            # Weight block index never changes across the batch grid => one
            # VMEM buffer suffices (halves its footprint vs. double buffering).
            w_spec = pl.BlockSpec((F_pad, C_pad), lambda i: (0, 0),
                                  pipeline_mode=pl.Buffered(1))
        else:
            w_spec = pl.BlockSpec((F_pad, C_pad), lambda i: (0, 0))
        return pl.pallas_call(
            kernel,
            out_shape=jax.ShapeDtypeStruct((B_pad, C_pad), jnp.float32),
            grid=(B_pad // tb,),
            in_specs=[
                pl.BlockSpec((tb, F_pad), lambda i: (i, 0)),   # x tile
                w_spec,                                        # resident weight
                pl.BlockSpec((1, C_pad), lambda i: (0, 0)),    # column scales
            ],
            out_specs=pl.BlockSpec((tb, C_pad), lambda i: (i, 0)),
            compiler_params=params,
        )(x, w, colscale)

    try:
        return run(True)
    except Exception:
        # Some Pallas builds reject single-buffering; fall back to the default.
        return run(False)


# ---------------------------------------------------------------------------
# Path B: class-tiled two-pass scheme for large cls_num (VMEM-bounded).
# ---------------------------------------------------------------------------
def _make_stats_kernel(s, m, c_real, c_pad, tc):
    s10, c_cos, c_sin = _constants(s, m)
    need_mask = c_pad != c_real

    def kernel(x_ref, w_ref, colscale_ref, zmax_ref, ssum_ref):
        c = pl.program_id(1)

        @pl.when(c == 0)
        def _():
            zmax_ref[...] = jnp.full_like(zmax_ref, -1e30)
            ssum_ref[...] = jnp.zeros_like(ssum_ref)

        z_cos, z_arc = _cos_terms(x_ref[...], w_ref[...], colscale_ref[...],
                                  s10, c_cos, c_sin)
        if need_mask:
            neg = _pad_mask(c * tc, tc, c_real)
            z_cos = z_cos + neg
            z_arc = z_arc + neg

        m_old = zmax_ref[...]
        m_new = jnp.maximum(
            m_old, jnp.maximum(jnp.max(z_cos, axis=1, keepdims=True),
                               jnp.max(z_arc, axis=1, keepdims=True)))
        # Flash-style rescale of the running sum of exp(s*cosa*10 - zmax).
        ssum_ref[...] = (ssum_ref[...] * jnp.exp(m_old - m_new)
                         + jnp.sum(jnp.exp(z_cos - m_new), axis=1, keepdims=True))
        zmax_ref[...] = m_new

    return kernel


def _make_arcs_kernel(s, m, c_real, c_pad, tc):
    s10, c_cos, c_sin = _constants(s, m)
    need_mask = c_pad != c_real

    def kernel(x_ref, w_ref, colscale_ref, zmax_ref, ssum_ref, out_ref, t_ref):
        c = pl.program_id(1)

        @pl.when(c == 0)
        def _():
            t_ref[...] = jnp.zeros_like(t_ref)

        z_cos, z_arc = _cos_terms(x_ref[...], w_ref[...], colscale_ref[...],
                                  s10, c_cos, c_sin)
        if need_mask:
            neg = _pad_mask(c * tc, tc, c_real)
            z_cos = z_cos + neg
            z_arc = z_arc + neg

        zmax = zmax_ref[...]
        e_cos = jnp.exp(z_cos - zmax)
        e_arc = jnp.exp(z_arc - zmax)
        denom = ssum_ref[...] - e_cos + e_arc
        out_ref[...] = e_arc * pl.reciprocal(denom, approx=True)
        t_ref[...] += jnp.sum(out_ref[...], axis=1, keepdims=True)

    return kernel


def _arcsoftmax_tiled(x, w, colscale, s, m, c_real, tb, tc, vmem_limit):
    B_pad, F_pad = x.shape
    C_pad = w.shape[1]
    nb, nc = B_pad // tb, C_pad // tc
    params = pltpu.CompilerParams(dimension_semantics=("parallel", "arbitrary"),
                                  vmem_limit_bytes=vmem_limit)

    x_spec = pl.BlockSpec((tb, F_pad), lambda b, c: (b, 0))
    w_spec = pl.BlockSpec((F_pad, tc), lambda b, c: (0, c))
    cs_spec = pl.BlockSpec((1, tc), lambda b, c: (0, c))
    row_spec = pl.BlockSpec((tb, 1), lambda b, c: (b, 0))
    row_shape = jax.ShapeDtypeStruct((B_pad, 1), jnp.float32)

    # Pass 1: per-row shift (max of both exponents) and sum(exp(s*cosa*10)).
    zmax, ssum = pl.pallas_call(
        _make_stats_kernel(s, m, c_real, C_pad, tc),
        out_shape=(row_shape, row_shape),
        grid=(nb, nc),
        in_specs=[x_spec, w_spec, cs_spec],
        out_specs=(row_spec, row_spec),
        compiler_params=params,
    )(x, w, colscale)

    # Pass 2: un-normalized arcsoftmax per class tile + per-row totals.
    out_un, total = pl.pallas_call(
        _make_arcs_kernel(s, m, c_real, C_pad, tc),
        out_shape=(jax.ShapeDtypeStruct((B_pad, C_pad), jnp.float32), row_shape),
        grid=(nb, nc),
        in_specs=[x_spec, w_spec, cs_spec, row_spec, row_spec],
        out_specs=(pl.BlockSpec((tb, tc), lambda b, c: (b, c)), row_spec),
        compiler_params=params,
    )(x, w, colscale, zmax, ssum)

    # Final row renormalization (the module's `* 1/sum(arcsoftmax)`).
    return out_un / total


# ---------------------------------------------------------------------------
# Public wrapper.
# ---------------------------------------------------------------------------
def arcsoftmax(x, w, s, m, *, batch_tile=256, class_tile=None):
    """ArcFace-style softmax forward.

    x: (B, feature_num) f32, w: (feature_num, cls_num) f32, s/m Python floats.
    class_tile=None auto-selects the resident-weight path when it fits VMEM,
    otherwise (or if class_tile is given) the two-pass class-tiled path.
    """
    B, F = x.shape
    F2, C = w.shape
    assert F == F2
    x = x.astype(jnp.float32)
    w = w.astype(jnp.float32)

    # Lane-dense feature padding (zero rows/cols are free for norms and dots).
    F_pad = _round_up(F, 128)
    if F_pad != F:
        x = jnp.pad(x, ((0, 0), (0, F_pad - F)))
        w = jnp.pad(w, ((0, F_pad - F), (0, 0)))

    # Batch tiling: 256 fills the 256-wide v6e/v7x MXU; prefer >=2 grid steps
    # (v7x has 2 TensorCores) when that still leaves >=128-row tiles.
    tb = min(batch_tile, _round_up(B, 8))
    if _round_up(B, tb) // tb < 2:
        half = _round_up((B + 1) // 2, 8)
        if half >= 128:
            tb = half
    B_pad = _round_up(B, tb)
    if B_pad != B:
        x = jnp.pad(x, ((0, B_pad - B), (0, 0)))

    vmem_limit = _vmem_limit_bytes()

    # Class-axis strategy.
    C_pad128 = _round_up(C, 128)
    if class_tile is None:
        # Rough working-set estimate: (possibly double-buffered) weight block +
        # double-buffered x/out tiles + live (tb, C) temporaries.
        est = (2 * F_pad * C_pad128 + 2 * tb * F_pad + 8 * tb * C_pad128) * 4
        use_fullc = est <= (vmem_limit * 7) // 10
        tc = 2048
    else:
        use_fullc = False
        tc = int(class_tile)
    tc = min(max(128, _round_up(tc, 128)), C_pad128)
    C_pad = C_pad128 if use_fullc else _round_up(C, tc)
    if C_pad != C:
        w = jnp.pad(w, ((0, 0), (0, C_pad - C)))

    # Per-column inverse norms of w with the module's /10 folded in: a tiny
    # (1, C) vector computed once by XLA — no normalized-w copy ever hits HBM.
    colscale = jax.lax.rsqrt(
        jnp.maximum(jnp.sum(w * w, axis=0, keepdims=True), 1e-24)) * 0.1

    if use_fullc:
        out = _arcsoftmax_fullc(x, w, colscale, s, m, C, tb, vmem_limit)
    else:
        out = _arcsoftmax_tiled(x, w, colscale, s, m, C, tb, tc, vmem_limit)
    return out[:B, :C]


def _reference(x, w, s, m):
    # Pure-JAX replica of the PyTorch forward (arccos + cos, exact divides).
    x_norm = x / jnp.maximum(jnp.linalg.norm(x, axis=1, keepdims=True), 1e-12)
    w_norm = w / jnp.maximum(jnp.linalg.norm(w, axis=0, keepdims=True), 1e-12)
    cosa = (x_norm @ w_norm) / 10.0
    a = jnp.arccos(cosa)
    e_arc = jnp.exp(s * jnp.cos(a + m) * 10.0)
    e_cos = jnp.exp(s * cosa * 10.0)
    out = e_arc / (jnp.sum(e_cos, axis=1, keepdims=True) - e_cos + e_arc)
    return out / jnp.sum(out, axis=1, keepdims=True)


if __name__ == "__main__":
    key = jax.random.PRNGKey(0)
    kx, kw, kx2, kw2 = jax.random.split(key, 4)

    # NOTE: s=10 keeps the module's own formula representable in f32; with s=64
    # the PyTorch forward itself underflows exp(s*cos(a+m)*10) to 0 and the
    # final renormalization becomes 0/0 = NaN.
    s, m = 10.0, 0.5

    # Path A: resident single-buffered weight (w fits comfortably in VMEM).
    batch, feature_num, cls_num = 8, 64, 128
    x = jax.random.normal(kx, (batch, feature_num), dtype=jnp.float32)
    w = jax.random.normal(kw, (feature_num, cls_num), dtype=jnp.float32)

    out = jax.block_until_ready(arcsoftmax(x, w, s, m))
    ref = _reference(x, w, s, m)
    assert out.shape == (batch, cls_num)
    assert not jnp.any(jnp.isnan(out)), "NaN in kernel output (full-C path)"
    assert jnp.allclose(out, ref, atol=2e-3, rtol=2e-3), "mismatch (full-C path)"

    # Path B: class-tiled two-pass scheme; also exercises the lane-padding mask
    # (200 classes padded to 256, class_tile=128) and an unaligned feature dim.
    batch2, feat2, cls2 = 16, 96, 200
    x2 = jax.random.normal(kx2, (batch2, feat2), dtype=jnp.float32)
    w2 = jax.random.normal(kw2, (feat2, cls2), dtype=jnp.float32)

    out2 = jax.block_until_ready(arcsoftmax(x2, w2, s, m, class_tile=128))
    ref2 = _reference(x2, w2, s, m)
    assert out2.shape == (batch2, cls2)
    assert not jnp.any(jnp.isnan(out2)), "NaN in kernel output (tiled path)"
    assert jnp.allclose(out2, ref2, atol=2e-3, rtol=2e-3), "mismatch (tiled path)"

    print("KERNEL_OK")
</pallas_src>

<mosaic_0001>
module attributes {stable_mosaic.version = 11 : i64} {
  func.func @kernel(%arg0: i32, %arg1: memref<8x128xf32, #tpu.memory_space<vmem>>, %arg2: memref<128x128xf32, #tpu.memory_space<vmem>>, %arg3: memref<1x128xf32, #tpu.memory_space<vmem>>, %arg4: memref<8x128xf32, #tpu.memory_space<vmem>>) attributes {dimension_semantics = [#tpu.dimension_semantics<parallel>], iteration_bounds = array<i64: 1>, scalar_prefetch = 0 : i64, scratch_operands = 0 : i64, tpu.core_type = #tpu.core_type<tc>, window_params = [{transform_indices = @transform_0, window_bounds = array<i64: 8, 128>}, {pipeline_mode = #tpu.pipeline_mode<synchronous>, transform_indices = @transform_1, window_bounds = array<i64: 128, 128>}, {pipeline_mode = #tpu.pipeline_mode<synchronous>, transform_indices = @transform_2, window_bounds = array<i64: 1, 128>}, {transform_indices = @transform_3, window_bounds = array<i64: 8, 128>}]} {
    %c0 = arith.constant 0 : index
    %c0_0 = arith.constant 0 : index
    %0 = vector.load %arg1[%c0, %c0_0] : memref<8x128xf32, #tpu.memory_space<vmem>>, vector<8x128xf32>
    %c0_1 = arith.constant 0 : index
    %c0_2 = arith.constant 0 : index
    %1 = vector.load %arg2[%c0_1, %c0_2] : memref<128x128xf32, #tpu.memory_space<vmem>>, vector<128x128xf32>
    %c0_3 = arith.constant 0 : index
    %c0_4 = arith.constant 0 : index
    %2 = vector.load %arg3[%c0_3, %c0_4] : memref<1x128xf32, #tpu.memory_space<vmem>>, vector<1x128xf32>
    %3 = arith.mulf %0, %0 : vector<8x128xf32>
    %cst = arith.constant dense<0.000000e+00> : vector<8xf32>
    %4 = vector.multi_reduction <add>, %3, %cst [1] : vector<8x128xf32> to vector<8xf32>
    %5 = vector.shape_cast %4 : vector<8xf32> to vector<8x1xf32>
    %cst_5 = arith.constant 1.000000e-24 : f32
    %6 = vector.broadcast %cst_5 : f32 to vector<8x1xf32>
    %7 = arith.maximumf %5, %6 : vector<8x1xf32>
    %8 = math.rsqrt %7 : vector<8x1xf32>
    %cst_6 = arith.constant dense<0.000000e+00> : vector<8x128xf32>
    %9 = tpu.matmul %0, %1, %cst_6 {dimension_numbers = #tpu.dot_dimension_numbers<[1], [0], [0], [1], [0, 0, 1, 1], [], []>} : vector<8x128xf32>, vector<128x128xf32>, vector<8x128xf32> -> vector<8x128xf32>
    %10 = vector.broadcast %8 : vector<8x1xf32> to vector<8x128xf32>
    %11 = arith.mulf %9, %10 : vector<8x128xf32>
    %12 = vector.broadcast %2 : vector<1x128xf32> to vector<8x128xf32>
    %13 = arith.mulf %11, %12 : vector<8x128xf32>
    %14 = arith.mulf %13, %13 : vector<8x128xf32>
    %cst_7 = arith.constant 1.000000e+00 : f32
    %15 = vector.broadcast %cst_7 : f32 to vector<8x128xf32>
    %16 = arith.subf %15, %14 : vector<8x128xf32>
    %cst_8 = arith.constant 0.000000e+00 : f32
    %17 = vector.broadcast %cst_8 : f32 to vector<8x128xf32>
    %18 = arith.maximumf %16, %17 : vector<8x128xf32>
    %19 = math.sqrt %18 : vector<8x128xf32>
    %cst_9 = arith.constant 1.000000e+02 : f32
    %20 = vector.broadcast %cst_9 : f32 to vector<8x128xf32>
    %21 = arith.mulf %20, %13 : vector<8x128xf32>
    %cst_10 = arith.constant 87.758255 : f32
    %22 = vector.broadcast %cst_10 : f32 to vector<8x128xf32>
    %23 = arith.mulf %22, %13 : vector<8x128xf32>
    %cst_11 = arith.constant 47.9425545 : f32
    %24 = vector.broadcast %cst_11 : f32 to vector<8x128xf32>
    %25 = arith.mulf %24, %19 : vector<8x128xf32>
    %26 = arith.subf %23, %25 : vector<8x128xf32>
    %cst_12 = arith.constant dense<0xFF800000> : vector<8xf32>
    %27 = vector.multi_reduction <maximumf>, %21, %cst_12 [1] : vector<8x128xf32> to vector<8xf32>
    %28 = vector.shape_cast %27 : vector<8xf32> to vector<8x1xf32>
    %cst_13 = arith.constant dense<0xFF800000> : vector<8xf32>
    %29 = vector.multi_reduction <maximumf>, %26, %cst_13 [1] : vector<8x128xf32> to vector<8xf32>
    %30 = vector.shape_cast %29 : vector<8xf32> to vector<8x1xf32>
    %31 = arith.maximumf %28, %30 : vector<8x1xf32>
    %32 = vector.broadcast %31 : vector<8x1xf32> to vector<8x128xf32>
    %33 = arith.subf %21, %32 : vector<8x128xf32>
    %34 = math.exp %33 : vector<8x128xf32>
    %35 = vector.broadcast %31 : vector<8x1xf32> to vector<8x128xf32>
    %36 = arith.subf %26, %35 : vector<8x128xf32>
    %37 = math.exp %36 : vector<8x128xf32>
    %cst_14 = arith.constant dense<0.000000e+00> : vector<8xf32>
    %38 = vector.multi_reduction <add>, %34, %cst_14 [1] : vector<8x128xf32> to vector<8xf32>
    %39 = vector.shape_cast %38 : vector<8xf32> to vector<8x1xf32>
    %40 = vector.broadcast %39 : vector<8x1xf32> to vector<8x128xf32>
    %41 = arith.subf %40, %34 : vector<8x128xf32>
    %42 = arith.addf %41, %37 : vector<8x128xf32>
    %43 = tpu.reciprocal %42 {approx = true} : vector<8x128xf32> -> vector<8x128xf32>
    %44 = arith.mulf %37, %43 : vector<8x128xf32>
    %c0_15 = arith.constant 0 : index
    %c0_16 = arith.constant 0 : index
    %45 = vector.load %arg4[%c0_15, %c0_16] : memref<8x128xf32, #tpu.memory_space<vmem>>, vector<8x128xf32>
    tpu.vector_store %arg4[%c0_15, %c0_16], %44 {strides = array<i32>} : memref<8x128xf32, #tpu.memory_space<vmem>>, vector<8x128xf32>,
    %c0_17 = arith.constant 0 : index
    %c0_18 = arith.constant 0 : index
    %46 = vector.load %arg4[%c0_17, %c0_18] : memref<8x128xf32, #tpu.memory_space<vmem>>, vector<8x128xf32>
    %cst_19 = arith.constant dense<0.000000e+00> : vector<8xf32>
    %47 = vector.multi_reduction <add>, %46, %cst_19 [1] : vector<8x128xf32> to vector<8xf32>
    %48 = vector.shape_cast %47 : vector<8xf32> to vector<8x1xf32>
    %c0_20 = arith.constant 0 : index
    %c0_21 = arith.constant 0 : index
    %49 = vector.load %arg4[%c0_20, %c0_21] : memref<8x128xf32, #tpu.memory_space<vmem>>, vector<8x128xf32>
    %50 = tpu.reciprocal %48 {approx = true} : vector<8x1xf32> -> vector<8x1xf32>
    %51 = vector.broadcast %50 : vector<8x1xf32> to vector<8x128xf32>
    %52 = arith.mulf %49, %51 : vector<8x128xf32>
    %c0_22 = arith.constant 0 : index
    %c0_23 = arith.constant 0 : index
    %53 = vector.load %arg4[%c0_22, %c0_23] : memref<8x128xf32, #tpu.memory_space<vmem>>, vector<8x128xf32>
    tpu.vector_store %arg4[%c0_22, %c0_23], %52 {strides = array<i32>} : memref<8x128xf32, #tpu.memory_space<vmem>>, vector<8x128xf32>,
    return
  }
  func.func @transform_0(%arg0: i32) -> (i32, i32) {
    %c0_i32 = arith.constant 0 : i32
    %c0_i32_0 = arith.constant 0 : i32
    return %arg0, %c0_i32 : i32, i32
  }
  func.func @transform_1(%arg0: i32) -> (i32, i32) {
    %c0_i32 = arith.constant 0 : i32
    %c0_i32_0 = arith.constant 0 : i32
    %c0_i32_1 = arith.constant 0 : i32
    return %c0_i32, %c0_i32_0 : i32, i32
  }
  func.func @transform_2(%arg0: i32) -> (i32, i32) {
    %c0_i32 = arith.constant 0 : i32
    %c0_i32_0 = arith.constant 0 : i32
    %c0_i32_1 = arith.constant 0 : i32
    return %c0_i32, %c0_i32_0 : i32, i32
  }
  func.func @transform_3(%arg0: i32) -> (i32, i32) {
    %c0_i32 = arith.constant 0 : i32
    %c0_i32_0 = arith.constant 0 : i32
    return %arg0, %c0_i32 : i32, i32
  }
}

module attributes {stable_mosaic.version = 11 : i64} {
  func.func @kernel(%arg0: i32, %arg1: memref<8x128xf32, #tpu.memory_space<vmem>>, %arg2: memref<128x128xf32, #tpu.memory_space<vmem>>, %arg3: memref<1x128xf32, #tpu.memory_space<vmem>>, %arg4: memref<8x128xf32, #tpu.memory_space<vmem>>) attributes {dimension_semantics = [#tpu.dimension_semantics<parallel>], iteration_bounds = array<i64: 1>, scalar_prefetch = 0 : i64, scratch_operands = 0 : i64, tpu.core_type = #tpu.core_type<tc>, window_params = [{transform_indices = @transform_0, window_bounds = array<i64: 8, 128>}, {pipeline_mode = #tpu.pipeline_mode<synchronous>, transform_indices = @transform_1, window_bounds = array<i64: 128, 128>}, {pipeline_mode = #tpu.pipeline_mode<synchronous>, transform_indices = @transform_2, window_bounds = array<i64: 1, 128>}, {transform_indices = @transform_3, window_bounds = array<i64: 8, 128>}]} {
    %c0 = arith.constant 0 : index
    %c0_0 = arith.constant 0 : index
    %0 = vector.load %arg1[%c0, %c0_0] : memref<8x128xf32, #tpu.memory_space<vmem>>, vector<8x128xf32>
    %c0_1 = arith.constant 0 : index
    %c0_2 = arith.constant 0 : index
    %1 = vector.load %arg2[%c0_1, %c0_2] : memref<128x128xf32, #tpu.memory_space<vmem>>, vector<128x128xf32>
    %c0_3 = arith.constant 0 : index
    %c0_4 = arith.constant 0 : index
    %2 = vector.load %arg3[%c0_3, %c0_4] : memref<1x128xf32, #tpu.memory_space<vmem>>, vector<1x128xf32>
    %3 = arith.mulf %0, %0 : vector<8x128xf32>
    %cst = arith.constant dense<0.000000e+00> : vector<8xf32>
    %4 = vector.multi_reduction <add>, %3, %cst [1] : vector<8x128xf32> to vector<8xf32>
    %5 = vector.shape_cast %4 : vector<8xf32> to vector<8x1xf32>
    %cst_5 = arith.constant 1.000000e-24 : f32
    %6 = vector.broadcast %cst_5 : f32 to vector<8x1xf32>
    %7 = arith.maximumf %5, %6 : vector<8x1xf32>
    %8 = math.rsqrt %7 : vector<8x1xf32>
    %cst_6 = arith.constant dense<0.000000e+00> : vector<8x128xf32>
    %9 = tpu.matmul %0, %1, %cst_6 {dimension_numbers = #tpu.dot_dimension_numbers<[1], [0], [0], [1], [0, 0, 1, 1], [], []>} : vector<8x128xf32>, vector<128x128xf32>, vector<8x128xf32> -> vector<8x128xf32>
    %10 = vector.broadcast %8 : vector<8x1xf32> to vector<8x128xf32>
    %11 = arith.mulf %9, %10 : vector<8x128xf32>
    %12 = vector.broadcast %2 : vector<1x128xf32> to vector<8x128xf32>
    %13 = arith.mulf %11, %12 : vector<8x128xf32>
    %14 = arith.mulf %13, %13 : vector<8x128xf32>
    %cst_7 = arith.constant 1.000000e+00 : f32
    %15 = vector.broadcast %cst_7 : f32 to vector<8x128xf32>
    %16 = arith.subf %15, %14 : vector<8x128xf32>
    %cst_8 = arith.constant 0.000000e+00 : f32
    %17 = vector.broadcast %cst_8 : f32 to vector<8x128xf32>
    %18 = arith.maximumf %16, %17 : vector<8x128xf32>
    %19 = math.sqrt %18 : vector<8x128xf32>
    %cst_9 = arith.constant 1.000000e+02 : f32
    %20 = vector.broadcast %cst_9 : f32 to vector<8x128xf32>
    %21 = arith.mulf %20, %13 : vector<8x128xf32>
    %cst_10 = arith.constant 87.758255 : f32
    %22 = vector.broadcast %cst_10 : f32 to vector<8x128xf32>
    %23 = arith.mulf %22, %13 : vector<8x128xf32>
    %cst_11 = arith.constant 47.9425545 : f32
    %24 = vector.broadcast %cst_11 : f32 to vector<8x128xf32>
    %25 = arith.mulf %24, %19 : vector<8x128xf32>
    %26 = arith.subf %23, %25 : vector<8x128xf32>
    %cst_12 = arith.constant dense<0xFF800000> : vector<8xf32>
    %27 = vector.multi_reduction <maximumf>, %21, %cst_12 [1] : vector<8x128xf32> to vector<8xf32>
    %28 = vector.shape_cast %27 : vector<8xf32> to vector<8x1xf32>
    %cst_13 = arith.constant dense<0xFF800000> : vector<8xf32>
    %29 = vector.multi_reduction <maximumf>, %26, %cst_13 [1] : vector<8x128xf32> to vector<8xf32>
    %30 = vector.shape_cast %29 : vector<8xf32> to vector<8x1xf32>
    %31 = arith.maximumf %28, %30 : vector<8x1xf32>
    %32 = vector.broadcast %31 : vector<8x1xf32> to vector<8x128xf32>
    %33 = arith.subf %21, %32 : vector<8x128xf32>
    %34 = math.exp %33 : vector<8x128xf32>
    %35 = vector.broadcast %31 : vector<8x1xf32> to vector<8x128xf32>
    %36 = arith.subf %26, %35 : vector<8x128xf32>
    %37 = math.exp %36 : vector<8x128xf32>
    %cst_14 = arith.constant dense<0.000000e+00> : vector<8xf32>
    %38 = vector.multi_reduction <add>, %34, %cst_14 [1] : vector<8x128xf32> to vector<8xf32>
    %39 = vector.shape_cast %38 : vector<8xf32> to vector<8x1xf32>
    %40 = vector.broadcast %39 : vector<8x1xf32> to vector<8x128xf32>
    %41 = arith.subf %40, %34 : vector<8x128xf32>
    %42 = arith.addf %41, %37 : vector<8x128xf32>
    %43 = tpu.reciprocal %42 {approx = true} : vector<8x128xf32> -> vector<8x128xf32>
    %44 = arith.mulf %37, %43 : vector<8x128xf32>
    %c0_15 = arith.constant 0 : index
    %c0_16 = arith.constant 0 : index
    %45 = vector.load %arg4[%c0_15, %c0_16] : memref<8x128xf32, #tpu.memory_space<vmem>>, vector<8x128xf32>
    tpu.vector_store %arg4[%c0_15, %c0_16], %44 {strides = array<i32>} : memref<8x128xf32, #tpu.memory_space<vmem>>, vector<8x128xf32>,
    %c0_17 = arith.constant 0 : index
    %c0_18 = arith.constant 0 : index
    %46 = vector.load %arg4[%c0_17, %c0_18] : memref<8x128xf32, #tpu.memory_space<vmem>>, vector<8x128xf32>
    %cst_19 = arith.constant dense<0.000000e+00> : vector<8xf32>
    %47 = vector.multi_reduction <add>, %46, %cst_19 [1] : vector<8x128xf32> to vector<8xf32>
    %48 = vector.shape_cast %47 : vector<8xf32> to vector<8x1xf32>
    %c0_20 = arith.constant 0 : index
    %c0_21 = arith.constant 0 : index
    %49 = vector.load %arg4[%c0_20, %c0_21] : memref<8x128xf32, #tpu.memory_space<vmem>>, vector<8x128xf32>
    %50 = tpu.reciprocal %48 {approx = true} : vector<8x1xf32> -> vector<8x1xf32>
    %51 = vector.broadcast %50 : vector<8x1xf32> to vector<8x128xf32>
    %52 = arith.mulf %49, %51 : vector<8x128xf32>
    %c0_22 = arith.constant 0 : index
    %c0_23 = arith.constant 0 : index
    %53 = vector.load %arg4[%c0_22, %c0_23] : memref<8x128xf32, #tpu.memory_space<vmem>>, vector<8x128xf32>
    tpu.vector_store %arg4[%c0_22, %c0_23], %52 {strides = array<i32>} : memref<8x128xf32, #tpu.memory_space<vmem>>, vector<8x128xf32>,
    return
  }
  func.func @transform_0(%arg0: i32) -> (i32, i32) {
    %c0_i32 = arith.constant 0 : i32
    %c0_i32_0 = arith.constant 0 : i32
    return %arg0, %c0_i32 : i32, i32
  }
  func.func @transform_1(%arg0: i32) -> (i32, i32) {
    %c0_i32 = arith.constant 0 : i32
    %c0_i32_0 = arith.constant 0 : i32
    %c0_i32_1 = arith.constant 0 : i32
    return %c0_i32, %c0_i32_0 : i32, i32
  }
  func.func @transform_2(%arg0: i32) -> (i32, i32) {
    %c0_i32 = arith.constant 0 : i32
    %c0_i32_0 = arith.constant 0 : i32
    %c0_i32_1 = arith.constant 0 : i32
    return %c0_i32, %c0_i32_0 : i32, i32
  }
  func.func @transform_3(%arg0: i32) -> (i32, i32) {
    %c0_i32 = arith.constant 0 : i32
    %c0_i32_0 = arith.constant 0 : i32
    return %arg0, %c0_i32 : i32, i32
  }
}

</mosaic_0001>

<llo_original>
// kernel: tpu_custom_call.1
$region0: #{tpu_custom_call.1}
  #allocation0 [shape = 'u32[]', space=smem, size = 0x4, offset = 0x4, fixed_abs, tag = 'smem constant byte address 0x4 - core index']
  #allocation1 [shape = 'u32[144,128]{1,0:T(1,128)}', space=vmem, size = 0x12000, scoped, tag = 'internal scratch']
  %s0 = inlined_call_operand.hbm [shape: f32[8,128], index: 0, kind: input, shape index: {}]
  %s1 = inlined_call_operand.hbm [shape: f32[128,128], index: 1, kind: input, shape index: {}]
  %s2 = inlined_call_operand.vmem [shape: f32[1,128], index: 2, kind: input, shape index: {}]
  %s3 = inlined_call_operand.hbm [shape: f32[8,128], index: 3, kind: output, shape index: {}]
  %s4 = sld [smem:[#allocation0]]
  $region30: #{tpu_custom_call.1} parent=0
    _
  %s6 = ssub.s32 1, %s4
  %s7 = scalar_select 0, %s6, %s4
  $region1: #{tpu_custom_call.1} parent=0
    #allocation2 [shape = 'u8[4096]{0}', space=vmem, size = 0x1000, scoped, tag = 'input window, operand 0, single buffered']
    #allocation3 [shape = 's32[1]{0}', space=sflag, size = 0x4, scoped, tag = 'scoped memory for tpu_custom_call.1']
    #allocation4 [shape = 's32[1]{0}', space=sflag, size = 0x4, scoped, tag = 'scoped memory for tpu_custom_call.1']
    #allocation5 [shape = 'u8[65536]{0}', space=vmem, size = 0x10000, scoped, tag = 'input window, operand 1, single buffered']
    #allocation6 [shape = 's32[1]{0}', space=sflag, size = 0x4, scoped, tag = 'scoped memory for tpu_custom_call.1']
    #allocation7 [shape = 'u8[4096]{0}', space=vmem, size = 0x1000, scoped, tag = 'output window, operand 0, single buffered']
    %8 = vsyncpa [#allocation3], 0
    %9 = vsyncpa [#allocation6], 0
    %10 = vsyncpa [#allocation4], 0
    // Predicated region
    $region2: #{tpu_custom_call.1} parent=1 // pred_check
      _
    $region3: #{tpu_custom_call.1} parent=1 // pred_check_branch
      %12 = sbr.rel (0) target = $region5
    $region4: #{tpu_custom_call.1} parent=1 // pred_region
      %s14 = ssub.s32 128, 128
      %15 = vsyncadd [#allocation3], %s14
      %s17 = sshll.u32 [#allocation2], 4
      %s18 = int_to_ptr.vmem [resolvable:$true] %s17
      %20 = dma.hbm_to_vmem [thread:$0]  %s0, 128, %s18, [#allocation3]
    $region5: #{tpu_custom_call.1} parent=1 // pred_fallthru
      _
    // Predicated region
    $region6: #{tpu_custom_call.1} parent=1 // pred_check
      _
    $region7: #{tpu_custom_call.1} parent=1 // pred_check_branch
      %22 = sbr.rel (0) target = $region9
    $region8: #{tpu_custom_call.1} parent=1 // pred_region
      %s24 = ssub.s32 2048, 2048
      %25 = vsyncadd [#allocation6], %s24
      %s26 = sshll.u32 [#allocation5], 4
      %s27 = int_to_ptr.vmem [resolvable:$true] %s26
      %32 = dma.hbm_to_vmem [thread:$0]  %s1, 2048, %s27, [#allocation6], 128, 128, 8
    $region9: #{tpu_custom_call.1} parent=1 // pred_fallthru
      _
    // Predicated region
    $region10: #{tpu_custom_call.1} parent=1 // pred_check
      _
    $region11: #{tpu_custom_call.1} parent=1 // pred_check_branch
      %34 = sbr.rel (0) target = $region13
    $region12: #{tpu_custom_call.1} parent=1 // pred_region
      _
    $region13: #{tpu_custom_call.1} parent=1 // pred_fallthru
      _
    // Predicated region
    $region14: #{tpu_custom_call.1} parent=1 // pred_check
      _
    $region15: #{tpu_custom_call.1} parent=1 // pred_check_branch
      %36 = sbr.rel (0) target = $region17
    $region16: #{tpu_custom_call.1} parent=1 // pred_region
      %37 = dma.done [#allocation3], 128
    $region17: #{tpu_custom_call.1} parent=1 // pred_fallthru
      _
    // Predicated region
    $region18: #{tpu_custom_call.1} parent=1 // pred_check
      _
    $region19: #{tpu_custom_call.1} parent=1 // pred_check_branch
      %39 = sbr.rel (0) target = $region21
    $region20: #{tpu_custom_call.1} parent=1 // pred_region
      %40 = dma.done [#allocation6], 2048
    $region21: #{tpu_custom_call.1} parent=1 // pred_fallthru
      _
    %v41 = vld [vmem:[#allocation2] sm:$0xff]
    %v42 = vld [vmem:[#allocation5] sm:$0xff]
    %v43 = vld [vmem:[#allocation5 + $0x8] sm:$0xff]
    %v44 = vld [vmem:[#allocation5 + $0x10] sm:$0xff]
    %v45 = vld [vmem:[#allocation5 + $0x18] sm:$0xff]
    %v46 = vld [vmem:[#allocation5 + $0x20] sm:$0xff]
    %v47 = vld [vmem:[#allocation5 + $0x28] sm:$0xff]
    %v48 = vld [vmem:[#allocation5 + $0x30] sm:$0xff]
    %v49 = vld [vmem:[#allocation5 + $0x38] sm:$0xff]
    %v50 = vld [vmem:[#allocation5 + $0x40] sm:$0xff]
    %v51 = vld [vmem:[#allocation5 + $0x48] sm:$0xff]
    %v52 = vld [vmem:[#allocation5 + $0x50] sm:$0xff]
    %v53 = vld [vmem:[#allocation5 + $0x58] sm:$0xff]
    %v54 = vld [vmem:[#allocation5 + $0x60] sm:$0xff]
    %v55 = vld [vmem:[#allocation5 + $0x68] sm:$0xff]
    %v56 = vld [vmem:[#allocation5 + $0x70] sm:$0xff]
    %v57 = vld [vmem:[#allocation5 + $0x78] sm:$0xff]
    %v58 = vld [vmem:[%s2] sm:$0x1]
    %v59 = vmul.f32 %v41, %v41
    %60 = vadd.xlane.f32.xlu0 %v59
    %v61 = vpop.xlane.xlu0 %60
    %v62 = vmax.f32 %v61, 1e-24
    %v63 = vrsqrt.pop %v62
    %64 = vmatprep.subr.mxu0 0.0
    %65 = vmatpush1.msra.mxu0 %v42
    %66 = vmatprep.subr.mxu0 0.0
    %67 = vmatpush1.msra.mxu0 %v43
    %68 = vmatprep.subr.mxu0 0.0
    %69 = vmatpush1.msra.mxu0 %v44
    %70 = vmatprep.subr.mxu0 0.0
    %71 = vmatpush1.msra.mxu0 %v45
    %72 = vmatprep.subr.mxu0 0.0
    %73 = vmatpush1.msra.mxu0 %v46
    %74 = vmatprep.subr.mxu0 0.0
    %75 = vmatpush1.msra.mxu0 %v47
    %76 = vmatprep.subr.mxu0 0.0
    %77 = vmatpush1.msra.mxu0 %v48
    %78 = vmatprep.subr.mxu0 0.0
    %79 = vmatpush1.msra.mxu0 %v49
    %80 = vmatprep.subr.mxu0 0.0
    %81 = vmatpush1.msra.mxu0 %v50
    %82 = vmatprep.subr.mxu0 0.0
    %83 = vmatpush1.msra.mxu0 %v51
    %84 = vmatprep.subr.mxu0 0.0
    %85 = vmatpush1.msra.mxu0 %v52
    %86 = vmatprep.subr.mxu0 0.0
    %87 = vmatpush1.msra.mxu0 %v53
    %88 = vmatprep.subr.mxu0 0.0
    %89 = vmatpush1.msra.mxu0 %v54
    %90 = vmatprep.subr.mxu0 0.0
    %91 = vmatpush1.msra.mxu0 %v55
    %92 = vmatprep.subr.mxu0 0.0
    %93 = vmatpush1.msra.mxu0 %v56
    %94 = vmatprep.subr.mxu0 0.0
    %95 = vmatpush1.msra.mxu0 %v57
    %96 = vmatprep.subr.mxu0 0.0
    %97 = vmatpush1.msra.mxu0 0.0
    %98 = vmatprep.subr.mxu0 0.0
    %99 = vmatpush1.msra.mxu0 0.0
    %100 = vmatprep.subr.mxu0 0.0
    %101 = vmatpush1.msra.mxu0 0.0
    %102 = vmatprep.subr.mxu0 0.0
    %103 = vmatpush1.msra.mxu0 0.0
    %104 = vmatprep.subr.mxu0 0.0
    %105 = vmatpush1.msra.mxu0 0.0
    %106 = vmatprep.subr.mxu0 0.0
    %107 = vmatpush1.msra.mxu0 0.0
    %108 = vmatprep.subr.mxu0 0.0
    %109 = vmatpush1.msra.mxu0 0.0
    %110 = vmatprep.subr.mxu0 0.0
    %111 = vmatpush1.msra.mxu0 0.0
    %112 = vmatprep.subr.mxu0 0.0
    %113 = vmatpush1.msra.mxu0 0.0
    %114 = vmatprep.subr.mxu0 0.0
    %115 = vmatpush1.msra.mxu0 0.0
    %116 = vmatprep.subr.mxu0 0.0
    %117 = vmatpush1.msra.mxu0 0.0
    %118 = vmatprep.subr.mxu0 0.0
    %119 = vmatpush1.msra.mxu0 0.0
    %120 = vmatprep.subr.mxu0 0.0
    %121 = vmatpush1.msra.mxu0 0.0
    %122 = vmatprep.subr.mxu0 0.0
    %123 = vmatpush1.msra.mxu0 0.0
    %124 = vmatprep.subr.mxu0 0.0
    %125 = vmatpush1.msra.mxu0 0.0
    %126 = vmatprep.subr.mxu0 0.0
    %127 = vmatpush1.msra.mxu0 0.0
    %128 = vmatprep.mubr.f32.mxu0 0.0
    %129 = vmatmul.mubr.f32.gmra.mrb[0].mxu0 %v41
    %v130 = vpop.f32.mrb[0].mxu0
    %v131 = vadd.f32 0.0, %v130
    %v132 = vpop.f32.mrb[0].mxu0
    %133 = vdwg.mxu0
    %v134 = vmul.f32 %v131, %v63
    %v136 = vlaneseq
    %v137 = vshrl.u32 %v136, 7
    %v138 = vsub.s32 0, %v137
    %v139 = vrot.slane %v58, %v138
    %v141 = vmul.f32 %v134, %v139
    %v142 = vmul.f32 %v141, %v141
    %v143 = vsub.f32 1.0, %v142
    %v144 = vmax.f32 %v143, 0.0
    %v145 = vrsqrt.pop %v144
    %v146 = vmul.f32 %v144, %v145
    %vm147 = vcmp.eq.f32.partialorder %v144, inf
    %v148 = vsel %vm147, %v144, %v146
    %vm149 = vcmp.eq.f32.partialorder %v144, 0.0
    %v150 = vand.u32 %v144, 2147483648
    %v151 = vsel %vm149, %v150, %v148
    %v152 = vmul.f32 %v141, 100.0
    %v153 = vmul.f32 %v141, 87.758255
    %v154 = vmul.f32 %v151, 47.942554
    %v155 = vsub.f32 %v153, %v154
    %156 = vmax.xlane.f32.xlu0 %v152
    %v157 = vpop.xlane.xlu0 %156
    %158 = vmax.xlane.f32.xlu0 %v155
    %v159 = vpop.xlane.xlu0 %158
    %v160 = vmax.f32 %v157, %v159
    %v161 = vsub.f32 %v152, %v160
    %v162 = vmul.f32 %v161, 1.442695
    %v163 = vpow.pop %v162
    %v164 = vsub.f32 %v155, %v160
    %v165 = vmul.f32 %v164, 1.442695
    %v166 = vpow.pop %v165
    %167 = vadd.xlane.f32.xlu0 %v163
    %v168 = vpop.xlane.xlu0 %167
    %v169 = vsub.f32 %v168, %v163
    %v170 = vadd.f32 %v169, %v166
    %v171 = vrcp.pop %v170
    %v172 = vmul.f32 %v166, %v171
    %173 = vst [vmem:[#allocation7] sm:$0xff] %v172
    %v174 = vld [vmem:[#allocation7] sm:$0xff]
    %175 = vadd.xlane.f32.xlu0 %v174
    %v176 = vpop.xlane.xlu0 %175
    %v177 = vrcp.pop %v176
    %v178 = vmul.f32 %v174, %v177
    %179 = vst [vmem:[#allocation7] sm:$0xff] %v178
    // Predicated region
    $region22: #{tpu_custom_call.1} parent=1 // pred_check
      _
    $region23: #{tpu_custom_call.1} parent=1 // pred_check_branch
      %181 = sbr.rel (0) target = $region25
    $region24: #{tpu_custom_call.1} parent=1 // pred_region
      %s183 = ssub.s32 128, 128
      %184 = vsyncadd [#allocation4], %s183
      %s186 = sshll.u32 [#allocation7], 4
      %s187 = int_to_ptr.vmem [resolvable:$true] %s186
      %189 = dma.vmem_to_hbm [thread:$0]  %s187, 128, %s3, [#allocation4]
    $region25: #{tpu_custom_call.1} parent=1 // pred_fallthru
      _
    // Predicated region
    $region26: #{tpu_custom_call.1} parent=1 // pred_check
      _
    $region27: #{tpu_custom_call.1} parent=1 // pred_check_branch
      %191 = sbr.rel (0) target = $region29
    $region28: #{tpu_custom_call.1} parent=1 // pred_region
      %192 = dma.done [#allocation4], 128
    $region29: #{tpu_custom_call.1} parent=1 // pred_fallthru
      _
    %193 = vsyncpa [#allocation3], 1
    %194 = vsyncpa [#allocation6], 1
    %195 = vsyncpa [#allocation4], 1

// kernel: tpu_custom_call.1
$region0: #{tpu_custom_call.1}
  #allocation0 [shape = 'u32[]', space=smem, size = 0x4, offset = 0x4, fixed_abs, tag = 'smem constant byte address 0x4 - core index']
  #allocation1 [shape = 'u32[144,128]{1,0:T(1,128)}', space=vmem, size = 0x12000, scoped, tag = 'internal scratch']
  %s0 = inlined_call_operand.hbm [shape: f32[8,128], index: 0, kind: input, shape index: {}]
  %s1 = inlined_call_operand.hbm [shape: f32[128,128], index: 1, kind: input, shape index: {}]
  %s2 = inlined_call_operand.vmem [shape: f32[1,128], index: 2, kind: input, shape index: {}]
  %s3 = inlined_call_operand.hbm [shape: f32[8,128], index: 3, kind: output, shape index: {}]
  %s4 = sld [smem:[#allocation0]]
  $region30: #{tpu_custom_call.1} parent=0
    _
  %s6 = ssub.s32 1, %s4
  %s7 = scalar_select 0, %s6, %s4
  $region1: #{tpu_custom_call.1} parent=0
    #allocation2 [shape = 'u8[4096]{0}', space=vmem, size = 0x1000, scoped, tag = 'input window, operand 0, single buffered']
    #allocation3 [shape = 's32[1]{0}', space=sflag, size = 0x4, scoped, tag = 'scoped memory for tpu_custom_call.1']
    #allocation4 [shape = 's32[1]{0}', space=sflag, size = 0x4, scoped, tag = 'scoped memory for tpu_custom_call.1']
    #allocation5 [shape = 'u8[65536]{0}', space=vmem, size = 0x10000, scoped, tag = 'input window, operand 1, single buffered']
    #allocation6 [shape = 's32[1]{0}', space=sflag, size = 0x4, scoped, tag = 'scoped memory for tpu_custom_call.1']
    #allocation7 [shape = 'u8[4096]{0}', space=vmem, size = 0x1000, scoped, tag = 'output window, operand 0, single buffered']
    %8 = vsyncpa [#allocation3], 0
    %9 = vsyncpa [#allocation6], 0
    %10 = vsyncpa [#allocation4], 0
    // Predicated region
    $region2: #{tpu_custom_call.1} parent=1 // pred_check
      _
    $region3: #{tpu_custom_call.1} parent=1 // pred_check_branch
      %12 = sbr.rel (0) target = $region5
    $region4: #{tpu_custom_call.1} parent=1 // pred_region
      %s14 = ssub.s32 128, 128
      %15 = vsyncadd [#allocation3], %s14
      %s17 = sshll.u32 [#allocation2], 4
      %s18 = int_to_ptr.vmem [resolvable:$true] %s17
      %20 = dma.hbm_to_vmem [thread:$0]  %s0, 128, %s18, [#allocation3]
    $region5: #{tpu_custom_call.1} parent=1 // pred_fallthru
      _
    // Predicated region
    $region6: #{tpu_custom_call.1} parent=1 // pred_check
      _
    $region7: #{tpu_custom_call.1} parent=1 // pred_check_branch
      %22 = sbr.rel (0) target = $region9
    $region8: #{tpu_custom_call.1} parent=1 // pred_region
      %s24 = ssub.s32 2048, 2048
      %25 = vsyncadd [#allocation6], %s24
      %s26 = sshll.u32 [#allocation5], 4
      %s27 = int_to_ptr.vmem [resolvable:$true] %s26
      %32 = dma.hbm_to_vmem [thread:$0]  %s1, 2048, %s27, [#allocation6], 128, 128, 8
    $region9: #{tpu_custom_call.1} parent=1 // pred_fallthru
      _
    // Predicated region
    $region10: #{tpu_custom_call.1} parent=1 // pred_check
      _
    $region11: #{tpu_custom_call.1} parent=1 // pred_check_branch
      %34 = sbr.rel (0) target = $region13
    $region12: #{tpu_custom_call.1} parent=1 // pred_region
      _
    $region13: #{tpu_custom_call.1} parent=1 // pred_fallthru
      _
    // Predicated region
    $region14: #{tpu_custom_call.1} parent=1 // pred_check
      _
    $region15: #{tpu_custom_call.1} parent=1 // pred_check_branch
      %36 = sbr.rel (0) target = $region17
    $region16: #{tpu_custom_call.1} parent=1 // pred_region
      %37 = dma.done [#allocation3], 128
    $region17: #{tpu_custom_call.1} parent=1 // pred_fallthru
      _
    // Predicated region
    $region18: #{tpu_custom_call.1} parent=1 // pred_check
      _
    $region19: #{tpu_custom_call.1} parent=1 // pred_check_branch
      %39 = sbr.rel (0) target = $region21
    $region20: #{tpu_custom_call.1} parent=1 // pred_region
      %40 = dma.done [#allocation6], 2048
    $region21: #{tpu_custom_call.1} parent=1 // pred_fallthru
      _
    %v41 = vld [vmem:[#allocation2] sm:$0xff]
    %v42 = vld [vmem:[#allocation5] sm:$0xff]
    %v43 = vld [vmem:[#allocation5 + $0x8] sm:$0xff]
    %v44 = vld [vmem:[#allocation5 + $0x10] sm:$0xff]
    %v45 = vld [vmem:[#allocation5 + $0x18] sm:$0xff]
    %v46 = vld [vmem:[#allocation5 + $0x20] sm:$0xff]
    %v47 = vld [vmem:[#allocation5 + $0x28] sm:$0xff]
    %v48 = vld [vmem:[#allocation5 + $0x30] sm:$0xff]
    %v49 = vld [vmem:[#allocation5 + $0x38] sm:$0xff]
    %v50 = vld [vmem:[#allocation5 + $0x40] sm:$0xff]
    %v51 = vld [vmem:[#allocation5 + $0x48] sm:$0xff]
    %v52 = vld [vmem:[#allocation5 + $0x50] sm:$0xff]
    %v53 = vld [vmem:[#allocation5 + $0x58] sm:$0xff]
    %v54 = vld [vmem:[#allocation5 + $0x60] sm:$0xff]
    %v55 = vld [vmem:[#allocation5 + $0x68] sm:$0xff]
    %v56 = vld [vmem:[#allocation5 + $0x70] sm:$0xff]
    %v57 = vld [vmem:[#allocation5 + $0x78] sm:$0xff]
    %v58 = vld [vmem:[%s2] sm:$0x1]
    %v59 = vmul.f32 %v41, %v41
    %60 = vadd.xlane.f32.xlu0 %v59
    %v61 = vpop.xlane.xlu0 %60
    %v62 = vmax.f32 %v61, 1e-24
    %v63 = vrsqrt.pop %v62
    %64 = vmatprep.subr.mxu0 0.0
    %65 = vmatpush1.msra.mxu0 %v42
    %66 = vmatprep.subr.mxu0 0.0
    %67 = vmatpush1.msra.mxu0 %v43
    %68 = vmatprep.subr.mxu0 0.0
    %69 = vmatpush1.msra.mxu0 %v44
    %70 = vmatprep.subr.mxu0 0.0
    %71 = vmatpush1.msra.mxu0 %v45
    %72 = vmatprep.subr.mxu0 0.0
    %73 = vmatpush1.msra.mxu0 %v46
    %74 = vmatprep.subr.mxu0 0.0
    %75 = vmatpush1.msra.mxu0 %v47
    %76 = vmatprep.subr.mxu0 0.0
    %77 = vmatpush1.msra.mxu0 %v48
    %78 = vmatprep.subr.mxu0 0.0
    %79 = vmatpush1.msra.mxu0 %v49
    %80 = vmatprep.subr.mxu0 0.0
    %81 = vmatpush1.msra.mxu0 %v50
    %82 = vmatprep.subr.mxu0 0.0
    %83 = vmatpush1.msra.mxu0 %v51
    %84 = vmatprep.subr.mxu0 0.0
    %85 = vmatpush1.msra.mxu0 %v52
    %86 = vmatprep.subr.mxu0 0.0
    %87 = vmatpush1.msra.mxu0 %v53
    %88 = vmatprep.subr.mxu0 0.0
    %89 = vmatpush1.msra.mxu0 %v54
    %90 = vmatprep.subr.mxu0 0.0
    %91 = vmatpush1.msra.mxu0 %v55
    %92 = vmatprep.subr.mxu0 0.0
    %93 = vmatpush1.msra.mxu0 %v56
    %94 = vmatprep.subr.mxu0 0.0
    %95 = vmatpush1.msra.mxu0 %v57
    %96 = vmatprep.subr.mxu0 0.0
    %97 = vmatpush1.msra.mxu0 0.0
    %98 = vmatprep.subr.mxu0 0.0
    %99 = vmatpush1.msra.mxu0 0.0
    %100 = vmatprep.subr.mxu0 0.0
    %101 = vmatpush1.msra.mxu0 0.0
    %102 = vmatprep.subr.mxu0 0.0
    %103 = vmatpush1.msra.mxu0 0.0
    %104 = vmatprep.subr.mxu0 0.0
    %105 = vmatpush1.msra.mxu0 0.0
    %106 = vmatprep.subr.mxu0 0.0
    %107 = vmatpush1.msra.mxu0 0.0
    %108 = vmatprep.subr.mxu0 0.0
    %109 = vmatpush1.msra.mxu0 0.0
    %110 = vmatprep.subr.mxu0 0.0
    %111 = vmatpush1.msra.mxu0 0.0
    %112 = vmatprep.subr.mxu0 0.0
    %113 = vmatpush1.msra.mxu0 0.0
    %114 = vmatprep.subr.mxu0 0.0
    %115 = vmatpush1.msra.mxu0 0.0
    %116 = vmatprep.subr.mxu0 0.0
    %117 = vmatpush1.msra.mxu0 0.0
    %118 = vmatprep.subr.mxu0 0.0
    %119 = vmatpush1.msra.mxu0 0.0
    %120 = vmatprep.subr.mxu0 0.0
    %121 = vmatpush1.msra.mxu0 0.0
    %122 = vmatprep.subr.mxu0 0.0
    %123 = vmatpush1.msra.mxu0 0.0
    %124 = vmatprep.subr.mxu0 0.0
    %125 = vmatpush1.msra.mxu0 0.0
    %126 = vmatprep.subr.mxu0 0.0
    %127 = vmatpush1.msra.mxu0 0.0
    %128 = vmatprep.mubr.f32.mxu0 0.0
    %129 = vmatmul.mubr.f32.gmra.mrb[0].mxu0 %v41
    %v130 = vpop.f32.mrb[0].mxu0
    %v131 = vadd.f32 0.0, %v130
    %v132 = vpop.f32.mrb[0].mxu0
    %133 = vdwg.mxu0
    %v134 = vmul.f32 %v131, %v63
    %v136 = vlaneseq
    %v137 = vshrl.u32 %v136, 7
    %v138 = vsub.s32 0, %v137
    %v139 = vrot.slane %v58, %v138
    %v141 = vmul.f32 %v134, %v139
    %v142 = vmul.f32 %v141, %v141
    %v143 = vsub.f32 1.0, %v142
    %v144 = vmax.f32 %v143, 0.0
    %v145 = vrsqrt.pop %v144
    %v146 = vmul.f32 %v144, %v145
    %vm147 = vcmp.eq.f32.partialorder %v144, inf
    %v148 = vsel %vm147, %v144, %v146
    %vm149 = vcmp.eq.f32.partialorder %v144, 0.0
    %v150 = vand.u32 %v144, 2147483648
    %v151 = vsel %vm149, %v150, %v148
    %v152 = vmul.f32 %v141, 100.0
    %v153 = vmul.f32 %v141, 87.758255
    %v154 = vmul.f32 %v151, 47.942554
    %v155 = vsub.f32 %v153, %v154
    %156 = vmax.xlane.f32.xlu0 %v152
    %v157 = vpop.xlane.xlu0 %156
    %158 = vmax.xlane.f32.xlu0 %v155
    %v159 = vpop.xlane.xlu0 %158
    %v160 = vmax.f32 %v157, %v159
    %v161 = vsub.f32 %v152, %v160
    %v162 = vmul.f32 %v161, 1.442695
    %v163 = vpow.pop %v162
    %v164 = vsub.f32 %v155, %v160
    %v165 = vmul.f32 %v164, 1.442695
    %v166 = vpow.pop %v165
    %167 = vadd.xlane.f32.xlu0 %v163
    %v168 = vpop.xlane.xlu0 %167
    %v169 = vsub.f32 %v168, %v163
    %v170 = vadd.f32 %v169, %v166
    %v171 = vrcp.pop %v170
    %v172 = vmul.f32 %v166, %v171
    %173 = vst [vmem:[#allocation7] sm:$0xff] %v172
    %v174 = vld [vmem:[#allocation7] sm:$0xff]
    %175 = vadd.xlane.f32.xlu0 %v174
    %v176 = vpop.xlane.xlu0 %175
    %v177 = vrcp.pop %v176
    %v178 = vmul.f32 %v174, %v177
    %179 = vst [vmem:[#allocation7] sm:$0xff] %v178
    // Predicated region
    $region22: #{tpu_custom_call.1} parent=1 // pred_check
      _
    $region23: #{tpu_custom_call.1} parent=1 // pred_check_branch
      %181 = sbr.rel (0) target = $region25
    $region24: #{tpu_custom_call.1} parent=1 // pred_region
      %s183 = ssub.s32 128, 128
      %184 = vsyncadd [#allocation4], %s183
      %s186 = sshll.u32 [#allocation7], 4
      %s187 = int_to_ptr.vmem [resolvable:$true] %s186
      %189 = dma.vmem_to_hbm [thread:$0]  %s187, 128, %s3, [#allocation4]
    $region25: #{tpu_custom_call.1} parent=1 // pred_fallthru
      _
    // Predicated region
    $region26: #{tpu_custom_call.1} parent=1 // pred_check
      _
    $region27: #{tpu_custom_call.1} parent=1 // pred_check_branch
      %191 = sbr.rel (0) target = $region29
    $region28: #{tpu_custom_call.1} parent=1 // pred_region
      %192 = dma.done [#allocation4], 128
    $region29: #{tpu_custom_call.1} parent=1 // pred_fallthru
      _
    %193 = vsyncpa [#allocation3], 1
    %194 = vsyncpa [#allocation6], 1
    %195 = vsyncpa [#allocation4], 1

</llo_original>
